<compile_context>
chip_gen: v5e
topology: v5e:2x2
jax: 0.10.0
libtpu: 0.0.40
codegen_flags: <defaults>
</compile_context>

<pallas_src>
import math

import jax
import jax.numpy as jnp
from jax.experimental import pallas as pl
from jax.experimental.pallas import tpu as pltpu


_MXU = 256                 # MXU tile width on v6e/v7x (v5e=128; kernel is mem-bound there anyway)
_VMEM_LIMIT = 32 << 20     # explicit scoped-VMEM limit: safe on v5e/v6e/v7x
_VMEM_BUDGET = 24 << 20    # what the kernel is allowed to use (headroom under the limit)
_WEIGHT_BUDGET = 4 << 20   # bf16 bytes for kron'd weights (x2 for double buffering -> 8 MiB)


def _mlp_kernel(x_ref, w1_ref, b1_ref, w2_ref, b2_ref, o_ref):
    # x_ref : (rows, G*D)   bf16  packed activation tile (streamed)
    # w1_ref: (G*D, G*H)    bf16  kron(I_G, W1)           (resident)
    # b1_ref: (1,   G*H)    f32
    # w2_ref: (G*H, G*Lp)   bf16  kron(I_G, W2_padded)    (resident)
    # b2_ref: (1,   G*Lp)   f32
    # o_ref : (rows, G*Lp)  f32   packed logits tile (lane-dense when G*Lp == 128)
    h = jnp.dot(x_ref[...], w1_ref[...], preferred_element_type=jnp.float32)
    h = jnp.maximum(h + b1_ref[...], 0.0)          # bias + ReLU in f32
    h = h.astype(jnp.bfloat16)                     # bf16 feed for the second MXU pass
    o_ref[...] = (
        jnp.dot(h, w2_ref[...], preferred_element_type=jnp.float32) + b2_ref[...]
    )


def _choose_packing(D, H, L):
    """Pick (G, Lp): pack G batch rows per lane-row; zero-pad classes L -> Lp with 128 % Lp == 0."""
    if L > 128:
        return 1, ((L + 127) // 128) * 128         # wide head: just lane-align, no row packing
    Lp = L
    while 128 % Lp:
        Lp += 1
    best_g, best_cost = 1, None
    G = 1
    while G * Lp <= 128:
        wbytes = G * G * (D * H + H * Lp) * 2      # bf16 kron'd weights
        if wbytes <= _WEIGHT_BUDGET or G == 1:
            # MXU pushes per original batch row (8 packed rows per push group).
            p1 = math.ceil(G * D / _MXU) * math.ceil(G * H / _MXU)
            p2 = math.ceil(G * H / _MXU) * math.ceil(G * Lp / _MXU)
            mxu_cost = (p1 + p2) / (8.0 * G)
            lanes = G * Lp                          # output lane width -> store density
            lane_pen = 0.0 if lanes >= 128 else (0.02 if lanes >= 64 else 0.15)
            cost = mxu_cost + lane_pen
            if best_cost is None or cost < best_cost - 1e-9 or (
                abs(cost - best_cost) <= 1e-9 and G > best_g
            ):
                best_g, best_cost = G, cost
        G *= 2
    return best_g, Lp


def node_classifier2_forward(x, w1, b1, w2, b2):
    """x:(B,D) f32, w1:(D,H), b1:(H,), w2:(H,L), b2:(L,)  ->  logits (B,L) f32."""
    B, D = x.shape
    H = w1.shape[1]
    L = w2.shape[1]

    G, Lp = _choose_packing(D, H, L)

    # Zero-pad the class dimension so Lp | 128 (padded logits sliced off below).
    if Lp != L:
        w2 = jnp.pad(w2, ((0, 0), (0, Lp - L)))
        b2 = jnp.pad(b2, (0, Lp - L))

    # Block-diagonal (kron) weights + tiled biases; weights bf16, biases f32.
    eye = jnp.eye(G, dtype=jnp.float32)
    w1b = jnp.kron(eye, w1.astype(jnp.float32)).astype(jnp.bfloat16)   # (G*D, G*H)
    w2b = jnp.kron(eye, w2.astype(jnp.float32)).astype(jnp.bfloat16)   # (G*H, G*Lp)
    b1b = jnp.tile(b1.astype(jnp.float32), G).reshape(1, G * H)
    b2b = jnp.tile(b2.astype(jnp.float32), G).reshape(1, G * Lp)

    # --- tile selection (rows of *packed* input per grid step) ----------------
    bytes_x_row = G * D * 2                          # bf16 packed input row
    bytes_o_row = G * Lp * 4                         # f32 packed logits row
    weights_vmem = 2 * (w1b.size + w2b.size) * 2 + 2 * (b1b.size + b2b.size) * 4
    stream_per_row = 2 * (bytes_x_row + bytes_o_row)  # double-buffered in + out
    max_rows = max(8, (int((_VMEM_BUDGET - weights_vmem) // stream_per_row) // 8) * 8)
    target_rows = max(8, ((-(-(2 << 20) // bytes_x_row)) + 7) // 8 * 8)  # >= 2 MiB of x / step
    rows = min(max_rows, target_rows)

    packed_needed = -(-B // G)                       # ceil(B / G)
    aligned = ((packed_needed + 7) // 8) * 8
    rows = max(8, min(rows, aligned))
    if aligned >= 16:                                # keep grid >= 2 so both v7x TCs get work
        rows = min(rows, max(8, (aligned // 16) * 8))

    packed_padded = (-(-packed_needed // rows)) * rows
    b_padded = packed_padded * G
    grid = (packed_padded // rows,)

    # Cast, pad the batch, and pack G consecutive rows per lane-row (row-major reshape).
    xp = x.astype(jnp.bfloat16)
    if b_padded != B:
        xp = jnp.pad(xp, ((0, b_padded - B), (0, 0)))
    xp = xp.reshape(packed_padded, G * D)

    out = pl.pallas_call(
        _mlp_kernel,
        out_shape=jax.ShapeDtypeStruct((packed_padded, G * Lp), jnp.float32),
        grid_spec=pl.GridSpec(
            grid=grid,
            in_specs=[
                pl.BlockSpec((rows, G * D), lambda i: (i, 0)),     # x: streamed over batch
                pl.BlockSpec((G * D, G * H), lambda i: (0, 0)),    # w1: full, resident
                pl.BlockSpec((1, G * H), lambda i: (0, 0)),        # b1
                pl.BlockSpec((G * H, G * Lp), lambda i: (0, 0)),   # w2: full, resident
                pl.BlockSpec((1, G * Lp), lambda i: (0, 0)),       # b2
            ],
            out_specs=pl.BlockSpec((rows, G * Lp), lambda i: (i, 0)),
        ),
        compiler_params=pltpu.CompilerParams(
            dimension_semantics=("parallel",),
            vmem_limit_bytes=_VMEM_LIMIT,
        ),
    )(xp, w1b, b1b, w2b, b2b)

    # Undo row packing, batch padding, and class padding.
    return out.reshape(b_padded, Lp)[:B, :L]


def init_params(key, input_dim, num_labels, hidden=64):
    # nn.Linear-style init: U(-1/sqrt(fan_in), +1/sqrt(fan_in)); weights stored (in, out).
    k1, k2, k3, k4 = jax.random.split(key, 4)
    bound1 = 1.0 / jnp.sqrt(jnp.float32(input_dim))
    bound2 = 1.0 / jnp.sqrt(jnp.float32(hidden))
    w1 = jax.random.uniform(k1, (input_dim, hidden), jnp.float32, -bound1, bound1)
    b1 = jax.random.uniform(k2, (hidden,), jnp.float32, -bound1, bound1)
    w2 = jax.random.uniform(k3, (hidden, num_labels), jnp.float32, -bound2, bound2)
    b2 = jax.random.uniform(k4, (num_labels,), jnp.float32, -bound2, bound2)
    return w1, b1, w2, b2


if __name__ == "__main__":
    def run_case(case_key, batch, input_dim, num_labels):
        k_x, k_p = jax.random.split(case_key)
        x = jax.random.normal(k_x, (batch, input_dim), jnp.float32)
        w1, b1, w2, b2 = init_params(k_p, input_dim, num_labels)

        logits = jax.block_until_ready(node_classifier2_forward(x, w1, b1, w2, b2))
        assert logits.shape == (batch, num_labels)
        assert logits.dtype == jnp.float32

        # bf16-matched reference (same quantization points as the kernel) -> tight check.
        h = jnp.dot(x.astype(jnp.bfloat16), w1.astype(jnp.bfloat16),
                    preferred_element_type=jnp.float32) + b1
        h = jnp.maximum(h, 0.0).astype(jnp.bfloat16)
        ref_bf = jnp.dot(h, w2.astype(jnp.bfloat16),
                         preferred_element_type=jnp.float32) + b2
        # Full-precision reference = PyTorch module in eval mode (dropout identity) -> loose check.
        ref_f32 = jnp.maximum(x @ w1 + b1, 0.0) @ w2 + b2

        assert jnp.allclose(logits, ref_bf, atol=5e-3, rtol=5e-3), float(
            jnp.max(jnp.abs(logits - ref_bf)))
        assert jnp.allclose(logits, ref_f32, atol=1e-1, rtol=5e-2), float(
            jnp.max(jnp.abs(logits - ref_f32)))

    key = jax.random.PRNGKey(0)
    k1, k2, k3, k4 = jax.random.split(key, 4)
    run_case(k1, batch=8, input_dim=32, num_labels=8)      # packed path, tiny batch (grid=1)
    run_case(k2, batch=200, input_dim=48, num_labels=8)    # pad + slice tail, grid>=2
    run_case(k3, batch=100, input_dim=32, num_labels=10)   # L=10 -> class-padded to 16, packed
    run_case(k4, batch=4096, input_dim=32, num_labels=8)   # larger batch, multi-tile streaming

    print("KERNEL_OK")
</pallas_src>

<mosaic_0001>
module attributes {stable_mosaic.version = 11 : i64} {
  func.func @_mlp_kernel(%arg0: i32, %arg1: memref<8x256xbf16, #tpu.memory_space<vmem>>, %arg2: memref<256x512xbf16, #tpu.memory_space<vmem>>, %arg3: memref<1x512xf32, #tpu.memory_space<vmem>>, %arg4: memref<512x64xbf16, #tpu.memory_space<vmem>>, %arg5: memref<1x64xf32, #tpu.memory_space<vmem>>, %arg6: memref<8x64xf32, #tpu.memory_space<vmem>>) attributes {dimension_semantics = [#tpu.dimension_semantics<parallel>], iteration_bounds = array<i64: 1>, scalar_prefetch = 0 : i64, scratch_operands = 0 : i64, tpu.core_type = #tpu.core_type<tc>, window_params = [{transform_indices = @transform_0, window_bounds = array<i64: 8, 256>}, {pipeline_mode = #tpu.pipeline_mode<synchronous>, transform_indices = @transform_1, window_bounds = array<i64: 256, 512>}, {pipeline_mode = #tpu.pipeline_mode<synchronous>, transform_indices = @transform_2, window_bounds = array<i64: 1, 512>}, {pipeline_mode = #tpu.pipeline_mode<synchronous>, transform_indices = @transform_3, window_bounds = array<i64: 512, 64>}, {pipeline_mode = #tpu.pipeline_mode<synchronous>, transform_indices = @transform_4, window_bounds = array<i64: 1, 64>}, {transform_indices = @transform_5, window_bounds = array<i64: 8, 64>}]} {
    %c0 = arith.constant 0 : index
    %c0_0 = arith.constant 0 : index
    %0 = vector.load %arg1[%c0, %c0_0] : memref<8x256xbf16, #tpu.memory_space<vmem>>, vector<8x256xbf16>
    %c0_1 = arith.constant 0 : index
    %c0_2 = arith.constant 0 : index
    %1 = vector.load %arg2[%c0_1, %c0_2] : memref<256x512xbf16, #tpu.memory_space<vmem>>, vector<256x512xbf16>
    %cst = arith.constant dense<0.000000e+00> : vector<8x512xf32>
    %2 = tpu.matmul %0, %1, %cst {dimension_numbers = #tpu.dot_dimension_numbers<[1], [0], [0], [1], [0, 0, 1, 1], [], []>} : vector<8x256xbf16>, vector<256x512xbf16>, vector<8x512xf32> -> vector<8x512xf32>
    %c0_3 = arith.constant 0 : index
    %c0_4 = arith.constant 0 : index
    %3 = vector.load %arg3[%c0_3, %c0_4] : memref<1x512xf32, #tpu.memory_space<vmem>>, vector<1x512xf32>
    %4 = vector.broadcast %3 : vector<1x512xf32> to vector<8x512xf32>
    %5 = arith.addf %2, %4 : vector<8x512xf32>
    %cst_5 = arith.constant 0.000000e+00 : f32
    %6 = vector.broadcast %cst_5 : f32 to vector<8x512xf32>
    %7 = arith.maximumf %5, %6 : vector<8x512xf32>
    %8 = arith.truncf %7 : vector<8x512xf32> to vector<8x512xbf16>
    %c0_6 = arith.constant 0 : index
    %c0_7 = arith.constant 0 : index
    %9 = vector.load %arg4[%c0_6, %c0_7] : memref<512x64xbf16, #tpu.memory_space<vmem>>, vector<512x64xbf16>
    %cst_8 = arith.constant dense<0.000000e+00> : vector<8x64xf32>
    %10 = tpu.matmul %8, %9, %cst_8 {dimension_numbers = #tpu.dot_dimension_numbers<[1], [0], [0], [1], [0, 0, 1, 1], [], []>} : vector<8x512xbf16>, vector<512x64xbf16>, vector<8x64xf32> -> vector<8x64xf32>
    %c0_9 = arith.constant 0 : index
    %c0_10 = arith.constant 0 : index
    %11 = vector.load %arg5[%c0_9, %c0_10] : memref<1x64xf32, #tpu.memory_space<vmem>>, vector<1x64xf32>
    %12 = vector.broadcast %11 : vector<1x64xf32> to vector<8x64xf32>
    %13 = arith.addf %10, %12 : vector<8x64xf32>
    %c0_11 = arith.constant 0 : index
    %c0_12 = arith.constant 0 : index
    %14 = vector.load %arg6[%c0_11, %c0_12] : memref<8x64xf32, #tpu.memory_space<vmem>>, vector<8x64xf32>
    tpu.vector_store %arg6[%c0_11, %c0_12], %13 {strides = array<i32>} : memref<8x64xf32, #tpu.memory_space<vmem>>, vector<8x64xf32>,
    return
  }
  func.func @transform_0(%arg0: i32) -> (i32, i32) {
    %c0_i32 = arith.constant 0 : i32
    %c0_i32_0 = arith.constant 0 : i32
    return %arg0, %c0_i32 : i32, i32
  }
  func.func @transform_1(%arg0: i32) -> (i32, i32) {
    %c0_i32 = arith.constant 0 : i32
    %c0_i32_0 = arith.constant 0 : i32
    %c0_i32_1 = arith.constant 0 : i32
    return %c0_i32, %c0_i32_0 : i32, i32
  }
  func.func @transform_2(%arg0: i32) -> (i32, i32) {
    %c0_i32 = arith.constant 0 : i32
    %c0_i32_0 = arith.constant 0 : i32
    %c0_i32_1 = arith.constant 0 : i32
    return %c0_i32, %c0_i32_0 : i32, i32
  }
  func.func @transform_3(%arg0: i32) -> (i32, i32) {
    %c0_i32 = arith.constant 0 : i32
    %c0_i32_0 = arith.constant 0 : i32
    %c0_i32_1 = arith.constant 0 : i32
    return %c0_i32, %c0_i32_0 : i32, i32
  }
  func.func @transform_4(%arg0: i32) -> (i32, i32) {
    %c0_i32 = arith.constant 0 : i32
    %c0_i32_0 = arith.constant 0 : i32
    %c0_i32_1 = arith.constant 0 : i32
    return %c0_i32, %c0_i32_0 : i32, i32
  }
  func.func @transform_5(%arg0: i32) -> (i32, i32) {
    %c0_i32 = arith.constant 0 : i32
    %c0_i32_0 = arith.constant 0 : i32
    return %arg0, %c0_i32 : i32, i32
  }
}

</mosaic_0001>

<llo_original>
// kernel: tpu_custom_call.1
$region0: #{tpu_custom_call.1}
  #allocation0 [shape = 'u32[]', space=smem, size = 0x4, offset = 0x4, fixed_abs, tag = 'smem constant byte address 0x4 - core index']
  #allocation1 [shape = 'u32[72,128]{1,0:T(1,128)}', space=vmem, size = 0x9000, scoped, tag = 'internal scratch']
  %s0 = inlined_call_operand.vmem [shape: bf16[8,256], index: 0, kind: input, shape index: {}]
  %s1 = inlined_call_operand.hbm [shape: bf16[256,512], index: 1, kind: input, shape index: {}]
  %s2 = inlined_call_operand.vmem [shape: f32[1,512], index: 2, kind: input, shape index: {}]
  %s3 = inlined_call_operand.vmem [shape: bf16[512,64], index: 3, kind: input, shape index: {}]
  %s4 = inlined_call_operand.vmem [shape: f32[1,64], index: 4, kind: input, shape index: {}]
  %s5 = inlined_call_operand.hbm [shape: f32[8,64], index: 5, kind: output, shape index: {}]
  %s6 = sld [smem:[#allocation0]]
  $region34: #{tpu_custom_call.1} parent=0
    _
  %s8 = ssub.s32 1, %s6
  %s9 = scalar_select 0, %s8, %s6
  $region1: #{tpu_custom_call.1} parent=0
    #allocation2 [shape = 'u8[262144]{0}', space=vmem, size = 0x40000, scoped, tag = 'input window, operand 1, single buffered']
    #allocation3 [shape = 's32[1]{0}', space=sflag, size = 0x4, scoped, tag = 'scoped memory for tpu_custom_call.1']
    #allocation4 [shape = 's32[1]{0}', space=sflag, size = 0x4, scoped, tag = 'scoped memory for tpu_custom_call.1']
    #allocation5 [shape = 'u8[4096]{0}', space=vmem, size = 0x1000, scoped, tag = 'output window, operand 0, single buffered']
    %10 = vsyncpa [#allocation3], 0
    %11 = vsyncpa [#allocation4], 0
    // Predicated region
    $region2: #{tpu_custom_call.1} parent=1 // pred_check
      _
    $region3: #{tpu_custom_call.1} parent=1 // pred_check_branch
      %13 = sbr.rel (0) target = $region5
    $region4: #{tpu_custom_call.1} parent=1 // pred_region
      _
    $region5: #{tpu_custom_call.1} parent=1 // pred_fallthru
      _
    // Predicated region
    $region6: #{tpu_custom_call.1} parent=1 // pred_check
      _
    $region7: #{tpu_custom_call.1} parent=1 // pred_check_branch
      %15 = sbr.rel (0) target = $region9
    $region8: #{tpu_custom_call.1} parent=1 // pred_region
      %17 = vsyncadd [#allocation3], 0
      %s18 = sshll.u32 %s1, 4
      %s19 = int_to_ptr.hbm [resolvable:$true] %s18
      %s20 = sshll.u32 [#allocation2], 4
      %s21 = int_to_ptr.vmem [resolvable:$true] %s20
      %26 = dma.hbm_to_vmem [thread:$0]  %s19, 8192, %s21, [#allocation3], 256, 256, 16
    $region9: #{tpu_custom_call.1} parent=1 // pred_fallthru
      _
    // Predicated region
    $region10: #{tpu_custom_call.1} parent=1 // pred_check
      _
    $region11: #{tpu_custom_call.1} parent=1 // pred_check_branch
      %28 = sbr.rel (0) target = $region13
    $region12: #{tpu_custom_call.1} parent=1 // pred_region
      _
    $region13: #{tpu_custom_call.1} parent=1 // pred_fallthru
      _
    // Predicated region
    $region14: #{tpu_custom_call.1} parent=1 // pred_check
      _
    $region15: #{tpu_custom_call.1} parent=1 // pred_check_branch
      %30 = sbr.rel (0) target = $region17
    $region16: #{tpu_custom_call.1} parent=1 // pred_region
      _
    $region17: #{tpu_custom_call.1} parent=1 // pred_fallthru
      _
    // Predicated region
    $region18: #{tpu_custom_call.1} parent=1 // pred_check
      _
    $region19: #{tpu_custom_call.1} parent=1 // pred_check_branch
      %32 = sbr.rel (0) target = $region21
    $region20: #{tpu_custom_call.1} parent=1 // pred_region
      _
    $region21: #{tpu_custom_call.1} parent=1 // pred_fallthru
      _
    // Predicated region
    $region22: #{tpu_custom_call.1} parent=1 // pred_check
      _
    $region23: #{tpu_custom_call.1} parent=1 // pred_check_branch
      %34 = sbr.rel (0) target = $region25
    $region24: #{tpu_custom_call.1} parent=1 // pred_region
      %36 = dma.done [#allocation3], 8192
    $region25: #{tpu_custom_call.1} parent=1 // pred_fallthru
      _
    %v37 = vld [vmem:[%s0] sm:$0xff]
    %v38 = vld [vmem:[#allocation2] sm:$0xff]
    %v39 = vld [vmem:[#allocation2 + $0x8] sm:$0xff]
    %v40 = vld [vmem:[#allocation2 + $0x10] sm:$0xff]
    %v41 = vld [vmem:[#allocation2 + $0x18] sm:$0xff]
    %v42 = vld [vmem:[#allocation2 + $0x20] sm:$0xff]
    %v43 = vld [vmem:[#allocation2 + $0x28] sm:$0xff]
    %v44 = vld [vmem:[#allocation2 + $0x30] sm:$0xff]
    %v45 = vld [vmem:[#allocation2 + $0x38] sm:$0xff]
    %v46 = vld [vmem:[#allocation2 + $0x40] sm:$0xff]
    %v47 = vld [vmem:[#allocation2 + $0x48] sm:$0xff]
    %v48 = vld [vmem:[#allocation2 + $0x50] sm:$0xff]
    %v49 = vld [vmem:[#allocation2 + $0x58] sm:$0xff]
    %v50 = vld [vmem:[#allocation2 + $0x60] sm:$0xff]
    %v51 = vld [vmem:[#allocation2 + $0x68] sm:$0xff]
    %v52 = vld [vmem:[#allocation2 + $0x70] sm:$0xff]
    %v53 = vld [vmem:[#allocation2 + $0x78] sm:$0xff]
    %v54 = vld [vmem:[#allocation2 + $0x80] sm:$0xff]
    %v55 = vld [vmem:[#allocation2 + $0x88] sm:$0xff]
    %v56 = vld [vmem:[#allocation2 + $0x90] sm:$0xff]
    %v57 = vld [vmem:[#allocation2 + $0x98] sm:$0xff]
    %v58 = vld [vmem:[#allocation2 + $0xa0] sm:$0xff]
    %v59 = vld [vmem:[#allocation2 + $0xa8] sm:$0xff]
    %v60 = vld [vmem:[#allocation2 + $0xb0] sm:$0xff]
    %v61 = vld [vmem:[#allocation2 + $0xb8] sm:$0xff]
    %v62 = vld [vmem:[#allocation2 + $0xc0] sm:$0xff]
    %v63 = vld [vmem:[#allocation2 + $0xc8] sm:$0xff]
    %v64 = vld [vmem:[#allocation2 + $0xd0] sm:$0xff]
    %v65 = vld [vmem:[#allocation2 + $0xd8] sm:$0xff]
    %v66 = vld [vmem:[#allocation2 + $0xe0] sm:$0xff]
    %v67 = vld [vmem:[#allocation2 + $0xe8] sm:$0xff]
    %v68 = vld [vmem:[#allocation2 + $0xf0] sm:$0xff]
    %v69 = vld [vmem:[#allocation2 + $0xf8] sm:$0xff]
    %v70 = vld [vmem:[#allocation2 + $0x100] sm:$0xff]
    %v71 = vld [vmem:[#allocation2 + $0x108] sm:$0xff]
    %v72 = vld [vmem:[#allocation2 + $0x110] sm:$0xff]
    %v73 = vld [vmem:[#allocation2 + $0x118] sm:$0xff]
    %v74 = vld [vmem:[#allocation2 + $0x120] sm:$0xff]
    %v75 = vld [vmem:[#allocation2 + $0x128] sm:$0xff]
    %v76 = vld [vmem:[#allocation2 + $0x130] sm:$0xff]
    %v77 = vld [vmem:[#allocation2 + $0x138] sm:$0xff]
    %v78 = vld [vmem:[#allocation2 + $0x140] sm:$0xff]
    %v79 = vld [vmem:[#allocation2 + $0x148] sm:$0xff]
    %v80 = vld [vmem:[#allocation2 + $0x150] sm:$0xff]
    %v81 = vld [vmem:[#allocation2 + $0x158] sm:$0xff]
    %v82 = vld [vmem:[#allocation2 + $0x160] sm:$0xff]
    %v83 = vld [vmem:[#allocation2 + $0x168] sm:$0xff]
    %v84 = vld [vmem:[#allocation2 + $0x170] sm:$0xff]
    %v85 = vld [vmem:[#allocation2 + $0x178] sm:$0xff]
    %v86 = vld [vmem:[#allocation2 + $0x180] sm:$0xff]
    %v87 = vld [vmem:[#allocation2 + $0x188] sm:$0xff]
    %v88 = vld [vmem:[#allocation2 + $0x190] sm:$0xff]
    %v89 = vld [vmem:[#allocation2 + $0x198] sm:$0xff]
    %v90 = vld [vmem:[#allocation2 + $0x1a0] sm:$0xff]
    %v91 = vld [vmem:[#allocation2 + $0x1a8] sm:$0xff]
    %v92 = vld [vmem:[#allocation2 + $0x1b0] sm:$0xff]
    %v93 = vld [vmem:[#allocation2 + $0x1b8] sm:$0xff]
    %v94 = vld [vmem:[#allocation2 + $0x1c0] sm:$0xff]
    %v95 = vld [vmem:[#allocation2 + $0x1c8] sm:$0xff]
    %v96 = vld [vmem:[#allocation2 + $0x1d0] sm:$0xff]
    %v97 = vld [vmem:[#allocation2 + $0x1d8] sm:$0xff]
    %v98 = vld [vmem:[#allocation2 + $0x1e0] sm:$0xff]
    %v99 = vld [vmem:[#allocation2 + $0x1e8] sm:$0xff]
    %v100 = vld [vmem:[#allocation2 + $0x1f0] sm:$0xff]
    %v101 = vld [vmem:[#allocation2 + $0x1f8] sm:$0xff]
    %v102 = vld [vmem:[%s2] sm:$0xf]
    %v104 = vperm.slane %v102, 0
    %v105 = vperm.slane %v102, 1
    %v106 = vperm.slane %v102, 2
    %v107 = vperm.slane %v102, 3
    %v113 = vunpack.c.l.b16 %v37
    %v114 = vunpack.c.h.b16 %v37
    %v115 = vpack.c.b16 %v113, %v113
    %v116 = vpack.c.b16 %v114, %v114
    %v183 = vunpack.c.l.b16 %v38
    %v184 = vunpack.c.h.b16 %v38
    %v185 = vunpack.c.l.b16 %v39
    %v186 = vunpack.c.h.b16 %v39
    %v187 = vunpack.c.l.b16 %v40
    %v188 = vunpack.c.h.b16 %v40
    %v189 = vunpack.c.l.b16 %v41
    %v190 = vunpack.c.h.b16 %v41
    %v191 = vunpack.c.l.b16 %v42
    %v192 = vunpack.c.h.b16 %v42
    %v193 = vunpack.c.l.b16 %v43
    %v194 = vunpack.c.h.b16 %v43
    %v195 = vunpack.c.l.b16 %v44
    %v196 = vunpack.c.h.b16 %v44
    %v197 = vunpack.c.l.b16 %v45
    %v198 = vunpack.c.h.b16 %v45
    %v199 = vunpack.c.l.b16 %v46
    %v200 = vunpack.c.h.b16 %v46
    %v201 = vunpack.c.l.b16 %v47
    %v202 = vunpack.c.h.b16 %v47
    %v203 = vunpack.c.l.b16 %v48
    %v204 = vunpack.c.h.b16 %v48
    %v205 = vunpack.c.l.b16 %v49
    %v206 = vunpack.c.h.b16 %v49
    %v207 = vunpack.c.l.b16 %v50
    %v208 = vunpack.c.h.b16 %v50
    %v209 = vunpack.c.l.b16 %v51
    %v210 = vunpack.c.h.b16 %v51
    %v211 = vunpack.c.l.b16 %v52
    %v212 = vunpack.c.h.b16 %v52
    %v213 = vunpack.c.l.b16 %v53
    %v214 = vunpack.c.h.b16 %v53
    %v215 = vunpack.c.l.b16 %v54
    %v216 = vunpack.c.h.b16 %v54
    %v217 = vunpack.c.l.b16 %v55
    %v218 = vunpack.c.h.b16 %v55
    %v219 = vunpack.c.l.b16 %v56
    %v220 = vunpack.c.h.b16 %v56
    %v221 = vunpack.c.l.b16 %v57
    %v222 = vunpack.c.h.b16 %v57
    %v223 = vunpack.c.l.b16 %v58
    %v224 = vunpack.c.h.b16 %v58
    %v225 = vunpack.c.l.b16 %v59
    %v226 = vunpack.c.h.b16 %v59
    %v227 = vunpack.c.l.b16 %v60
    %v228 = vunpack.c.h.b16 %v60
    %v229 = vunpack.c.l.b16 %v61
    %v230 = vunpack.c.h.b16 %v61
    %v231 = vunpack.c.l.b16 %v62
    %v232 = vunpack.c.h.b16 %v62
    %v233 = vunpack.c.l.b16 %v63
    %v234 = vunpack.c.h.b16 %v63
    %v235 = vunpack.c.l.b16 %v64
    %v236 = vunpack.c.h.b16 %v64
    %v237 = vunpack.c.l.b16 %v65
    %v238 = vunpack.c.h.b16 %v65
    %v239 = vunpack.c.l.b16 %v66
    %v240 = vunpack.c.h.b16 %v66
    %v241 = vunpack.c.l.b16 %v67
    %v242 = vunpack.c.h.b16 %v67
    %v243 = vunpack.c.l.b16 %v68
    %v244 = vunpack.c.h.b16 %v68
    %v245 = vunpack.c.l.b16 %v69
    %v246 = vunpack.c.h.b16 %v69
    %v247 = vunpack.c.l.b16 %v70
    %v248 = vunpack.c.h.b16 %v70
    %v249 = vunpack.c.l.b16 %v71
    %v250 = vunpack.c.h.b16 %v71
    %v251 = vunpack.c.l.b16 %v72
    %v252 = vunpack.c.h.b16 %v72
    %v253 = vunpack.c.l.b16 %v73
    %v254 = vunpack.c.h.b16 %v73
    %v255 = vunpack.c.l.b16 %v74
    %v256 = vunpack.c.h.b16 %v74
    %v257 = vunpack.c.l.b16 %v75
    %v258 = vunpack.c.h.b16 %v75
    %v259 = vunpack.c.l.b16 %v76
    %v260 = vunpack.c.h.b16 %v76
    %v261 = vunpack.c.l.b16 %v77
    %v262 = vunpack.c.h.b16 %v77
    %v263 = vunpack.c.l.b16 %v78
    %v264 = vunpack.c.h.b16 %v78
    %v265 = vunpack.c.l.b16 %v79
    %v266 = vunpack.c.h.b16 %v79
    %v267 = vunpack.c.l.b16 %v80
    %v268 = vunpack.c.h.b16 %v80
    %v269 = vunpack.c.l.b16 %v81
    %v270 = vunpack.c.h.b16 %v81
    %v271 = vunpack.c.l.b16 %v82
    %v272 = vunpack.c.h.b16 %v82
    %v273 = vunpack.c.l.b16 %v83
    %v274 = vunpack.c.h.b16 %v83
    %v275 = vunpack.c.l.b16 %v84
    %v276 = vunpack.c.h.b16 %v84
    %v277 = vunpack.c.l.b16 %v85
    %v278 = vunpack.c.h.b16 %v85
    %v279 = vunpack.c.l.b16 %v86
    %v280 = vunpack.c.h.b16 %v86
    %v281 = vunpack.c.l.b16 %v87
    %v282 = vunpack.c.h.b16 %v87
    %v283 = vunpack.c.l.b16 %v88
    %v284 = vunpack.c.h.b16 %v88
    %v285 = vunpack.c.l.b16 %v89
    %v286 = vunpack.c.h.b16 %v89
    %v287 = vunpack.c.l.b16 %v90
    %v288 = vunpack.c.h.b16 %v90
    %v289 = vunpack.c.l.b16 %v91
    %v290 = vunpack.c.h.b16 %v91
    %v291 = vunpack.c.l.b16 %v92
    %v292 = vunpack.c.h.b16 %v92
    %v293 = vunpack.c.l.b16 %v93
    %v294 = vunpack.c.h.b16 %v93
    %v295 = vunpack.c.l.b16 %v94
    %v296 = vunpack.c.h.b16 %v94
    %v297 = vunpack.c.l.b16 %v95
    %v298 = vunpack.c.h.b16 %v95
    %v299 = vunpack.c.l.b16 %v96
    %v300 = vunpack.c.h.b16 %v96
    %v301 = vunpack.c.l.b16 %v97
    %v302 = vunpack.c.h.b16 %v97
    %v303 = vunpack.c.l.b16 %v98
    %v304 = vunpack.c.h.b16 %v98
    %v305 = vunpack.c.l.b16 %v99
    %v306 = vunpack.c.h.b16 %v99
    %v307 = vunpack.c.l.b16 %v100
    %v308 = vunpack.c.h.b16 %v100
    %v309 = vunpack.c.l.b16 %v101
    %v310 = vunpack.c.h.b16 %v101
    %v311 = vpack.c.b16 %v187, %v183
    %v312 = vpack.c.b16 %v188, %v184
    %v313 = vpack.c.b16 %v189, %v185
    %v314 = vpack.c.b16 %v190, %v186
    %v315 = vpack.c.b16 %v195, %v191
    %v316 = vpack.c.b16 %v196, %v192
    %v317 = vpack.c.b16 %v197, %v193
    %v318 = vpack.c.b16 %v198, %v194
    %v319 = vpack.c.b16 %v203, %v199
    %v320 = vpack.c.b16 %v204, %v200
    %v321 = vpack.c.b16 %v205, %v201
    %v322 = vpack.c.b16 %v206, %v202
    %v323 = vpack.c.b16 %v211, %v207
    %v324 = vpack.c.b16 %v212, %v208
    %v325 = vpack.c.b16 %v213, %v209
    %v326 = vpack.c.b16 %v214, %v210
    %v327 = vpack.c.b16 %v219, %v215
    %v328 = vpack.c.b16 %v220, %v216
    %v329 = vpack.c.b16 %v221, %v217
    %v330 = vpack.c.b16 %v222, %v218
    %v331 = vpack.c.b16 %v227, %v223
    %v332 = vpack.c.b16 %v228, %v224
    %v333 = vpack.c.b16 %v229, %v225
    %v334 = vpack.c.b16 %v230, %v226
    %v335 = vpack.c.b16 %v235, %v231
    %v336 = vpack.c.b16 %v236, %v232
    %v337 = vpack.c.b16 %v237, %v233
    %v338 = vpack.c.b16 %v238, %v234
    %v339 = vpack.c.b16 %v243, %v239
    %v340 = vpack.c.b16 %v244, %v240
    %v341 = vpack.c.b16 %v245, %v241
    %v342 = vpack.c.b16 %v246, %v242
    %v343 = vpack.c.b16 %v251, %v247
    %v344 = vpack.c.b16 %v252, %v248
    %v345 = vpack.c.b16 %v253, %v249
    %v346 = vpack.c.b16 %v254, %v250
    %v347 = vpack.c.b16 %v259, %v255
    %v348 = vpack.c.b16 %v260, %v256
    %v349 = vpack.c.b16 %v261, %v257
    %v350 = vpack.c.b16 %v262, %v258
    %v351 = vpack.c.b16 %v267, %v263
    %v352 = vpack.c.b16 %v268, %v264
    %v353 = vpack.c.b16 %v269, %v265
    %v354 = vpack.c.b16 %v270, %v266
    %v355 = vpack.c.b16 %v275, %v271
    %v356 = vpack.c.b16 %v276, %v272
    %v357 = vpack.c.b16 %v277, %v273
    %v358 = vpack.c.b16 %v278, %v274
    %v359 = vpack.c.b16 %v283, %v279
    %v360 = vpack.c.b16 %v284, %v280
    %v361 = vpack.c.b16 %v285, %v281
    %v362 = vpack.c.b16 %v286, %v282
    %v363 = vpack.c.b16 %v291, %v287
    %v364 = vpack.c.b16 %v292, %v288
    %v365 = vpack.c.b16 %v293, %v289
    %v366 = vpack.c.b16 %v294, %v290
    %v367 = vpack.c.b16 %v299, %v295
    %v368 = vpack.c.b16 %v300, %v296
    %v369 = vpack.c.b16 %v301, %v297
    %v370 = vpack.c.b16 %v302, %v298
    %v371 = vpack.c.b16 %v307, %v303
    %v372 = vpack.c.b16 %v308, %v304
    %v373 = vpack.c.b16 %v309, %v305
    %v374 = vpack.c.b16 %v310, %v306
    %439 = vmatpush.bf16.msra.mxu0 %v339
    %440 = vmatpush.bf16.msra.mxu0 %v335
    %441 = vmatpush.bf16.msra.mxu0 %v331
    %442 = vmatpush.bf16.msra.mxu0 %v327
    %443 = vmatpush.bf16.msra.mxu0 %v323
    %444 = vmatpush.bf16.msra.mxu0 %v319
    %445 = vmatpush.bf16.msra.mxu0 %v315
    %446 = vmatpush.bf16.msra.mxu0 %v311
    %447 = vmatmul.bf16.gmra.mxu0 %v115
    %v448 = vpop.f32.mrf.mxu0
    %v449 = vadd.f32 %v104, %v448
    %v450 = vpop.f32.mrf.mxu0
    %451 = vdwg.mxu0
    %452 = vmatpush.bf16.msra.mxu0 %v371
    %453 = vmatpush.bf16.msra.mxu0 %v367
    %454 = vmatpush.bf16.msra.mxu0 %v363
    %455 = vmatpush.bf16.msra.mxu0 %v359
    %456 = vmatpush.bf16.msra.mxu0 %v355
    %457 = vmatpush.bf16.msra.mxu0 %v351
    %458 = vmatpush.bf16.msra.mxu0 %v347
    %459 = vmatpush.bf16.msra.mxu0 %v343
    %460 = vmatmul.bf16.gmra.mxu0 %v116
    %v461 = vpop.f32.mrf.mxu0
    %v462 = vadd.f32 %v449, %v461
    %v463 = vpop.f32.mrf.mxu0
    %464 = vdwg.mxu0
    %465 = vmatpush.bf16.msra.mxu0 %v340
    %466 = vmatpush.bf16.msra.mxu0 %v336
    %467 = vmatpush.bf16.msra.mxu0 %v332
    %468 = vmatpush.bf16.msra.mxu0 %v328
    %469 = vmatpush.bf16.msra.mxu0 %v324
    %470 = vmatpush.bf16.msra.mxu0 %v320
    %471 = vmatpush.bf16.msra.mxu0 %v316
    %472 = vmatpush.bf16.msra.mxu0 %v312
    %473 = vmatmul.bf16.gmra.mxu0 %v115
    %v474 = vpop.f32.mrf.mxu0
    %v475 = vadd.f32 %v105, %v474
    %v476 = vpop.f32.mrf.mxu0
    %477 = vdwg.mxu0
    %478 = vmatpush.bf16.msra.mxu0 %v372
    %479 = vmatpush.bf16.msra.mxu0 %v368
    %480 = vmatpush.bf16.msra.mxu0 %v364
    %481 = vmatpush.bf16.msra.mxu0 %v360
    %482 = vmatpush.bf16.msra.mxu0 %v356
    %483 = vmatpush.bf16.msra.mxu0 %v352
    %484 = vmatpush.bf16.msra.mxu0 %v348
    %485 = vmatpush.bf16.msra.mxu0 %v344
    %486 = vmatmul.bf16.gmra.mxu0 %v116
    %v487 = vpop.f32.mrf.mxu0
    %v488 = vadd.f32 %v475, %v487
    %v489 = vpop.f32.mrf.mxu0
    %490 = vdwg.mxu0
    %491 = vmatpush.bf16.msra.mxu0 %v341
    %492 = vmatpush.bf16.msra.mxu0 %v337
    %493 = vmatpush.bf16.msra.mxu0 %v333
    %494 = vmatpush.bf16.msra.mxu0 %v329
    %495 = vmatpush.bf16.msra.mxu0 %v325
    %496 = vmatpush.bf16.msra.mxu0 %v321
    %497 = vmatpush.bf16.msra.mxu0 %v317
    %498 = vmatpush.bf16.msra.mxu0 %v313
    %499 = vmatmul.bf16.gmra.mxu0 %v115
    %v500 = vpop.f32.mrf.mxu0
    %v501 = vadd.f32 %v106, %v500
    %v502 = vpop.f32.mrf.mxu0
    %503 = vdwg.mxu0
    %504 = vmatpush.bf16.msra.mxu0 %v373
    %505 = vmatpush.bf16.msra.mxu0 %v369
    %506 = vmatpush.bf16.msra.mxu0 %v365
    %507 = vmatpush.bf16.msra.mxu0 %v361
    %508 = vmatpush.bf16.msra.mxu0 %v357
    %509 = vmatpush.bf16.msra.mxu0 %v353
    %510 = vmatpush.bf16.msra.mxu0 %v349
    %511 = vmatpush.bf16.msra.mxu0 %v345
    %512 = vmatmul.bf16.gmra.mxu0 %v116
    %v513 = vpop.f32.mrf.mxu0
    %v514 = vadd.f32 %v501, %v513
    %v515 = vpop.f32.mrf.mxu0
    %516 = vdwg.mxu0
    %517 = vmatpush.bf16.msra.mxu0 %v342
    %518 = vmatpush.bf16.msra.mxu0 %v338
    %519 = vmatpush.bf16.msra.mxu0 %v334
    %520 = vmatpush.bf16.msra.mxu0 %v330
    %521 = vmatpush.bf16.msra.mxu0 %v326
    %522 = vmatpush.bf16.msra.mxu0 %v322
    %523 = vmatpush.bf16.msra.mxu0 %v318
    %524 = vmatpush.bf16.msra.mxu0 %v314
    %525 = vmatmul.bf16.gmra.mxu0 %v115
    %v526 = vpop.f32.mrf.mxu0
    %v527 = vadd.f32 %v107, %v526
    %v528 = vpop.f32.mrf.mxu0
    %529 = vdwg.mxu0
    %530 = vmatpush.bf16.msra.mxu0 %v374
    %531 = vmatpush.bf16.msra.mxu0 %v370
    %532 = vmatpush.bf16.msra.mxu0 %v366
    %533 = vmatpush.bf16.msra.mxu0 %v362
    %534 = vmatpush.bf16.msra.mxu0 %v358
    %535 = vmatpush.bf16.msra.mxu0 %v354
    %536 = vmatpush.bf16.msra.mxu0 %v350
    %537 = vmatpush.bf16.msra.mxu0 %v346
    %538 = vmatmul.bf16.gmra.mxu0 %v116
    %v539 = vpop.f32.mrf.mxu0
    %v540 = vadd.f32 %v527, %v539
    %v541 = vpop.f32.mrf.mxu0
    %542 = vdwg.mxu0
    %v543 = vmax.f32 %v462, 0.0
    %v544 = vmax.f32 %v488, 0.0
    %v545 = vmax.f32 %v514, 0.0
    %v546 = vmax.f32 %v540, 0.0
    %v547 = vpack.c.bf16 %v543, %v543
    %v548 = vpack.c.bf16 %v544, %v544
    %v549 = vpack.c.bf16 %v545, %v545
    %v550 = vpack.c.bf16 %v546, %v546
    %v551 = vld [vmem:[%s3] sm:$0xf]
    %v552 = vld [vmem:[%s3 + $0x4] sm:$0xf]
    %v553 = vld [vmem:[%s3 + $0x8] sm:$0xf]
    %v554 = vld [vmem:[%s3 + $0xc] sm:$0xf]
    %v555 = vld [vmem:[%s3 + $0x10] sm:$0xf]
    %v556 = vld [vmem:[%s3 + $0x14] sm:$0xf]
    %v557 = vld [vmem:[%s3 + $0x18] sm:$0xf]
    %v558 = vld [vmem:[%s3 + $0x1c] sm:$0xf]
    %v559 = vld [vmem:[%s3 + $0x20] sm:$0xf]
    %v560 = vld [vmem:[%s3 + $0x24] sm:$0xf]
    %v561 = vld [vmem:[%s3 + $0x28] sm:$0xf]
    %v562 = vld [vmem:[%s3 + $0x2c] sm:$0xf]
    %v563 = vld [vmem:[%s3 + $0x30] sm:$0xf]
    %v564 = vld [vmem:[%s3 + $0x34] sm:$0xf]
    %v565 = vld [vmem:[%s3 + $0x38] sm:$0xf]
    %v566 = vld [vmem:[%s3 + $0x3c] sm:$0xf]
    %v567 = vld [vmem:[%s3 + $0x40] sm:$0xf]
    %v568 = vld [vmem:[%s3 + $0x44] sm:$0xf]
    %v569 = vld [vmem:[%s3 + $0x48] sm:$0xf]
    %v570 = vld [vmem:[%s3 + $0x4c] sm:$0xf]
    %v571 = vld [vmem:[%s3 + $0x50] sm:$0xf]
    %v572 = vld [vmem:[%s3 + $0x54] sm:$0xf]
    %v573 = vld [vmem:[%s3 + $0x58] sm:$0xf]
    %v574 = vld [vmem:[%s3 + $0x5c] sm:$0xf]
    %v575 = vld [vmem:[%s3 + $0x60] sm:$0xf]
    %v576 = vld [vmem:[%s3 + $0x64] sm:$0xf]
    %v577 = vld [vmem:[%s3 + $0x68] sm:$0xf]
    %v578 = vld [vmem:[%s3 + $0x6c] sm:$0xf]
    %v579 = vld [vmem:[%s3 + $0x70] sm:$0xf]
    %v580 = vld [vmem:[%s3 + $0x74] sm:$0xf]
    %v581 = vld [vmem:[%s3 + $0x78] sm:$0xf]
    %v582 = vld [vmem:[%s3 + $0x7c] sm:$0xf]
    %v583 = vld [vmem:[%s3 + $0x80] sm:$0xf]
    %v584 = vld [vmem:[%s3 + $0x84] sm:$0xf]
    %v585 = vld [vmem:[%s3 + $0x88] sm:$0xf]
    %v586 = vld [vmem:[%s3 + $0x8c] sm:$0xf]
    %v587 = vld [vmem:[%s3 + $0x90] sm:$0xf]
    %v588 = vld [vmem:[%s3 + $0x94] sm:$0xf]
    %v589 = vld [vmem:[%s3 + $0x98] sm:$0xf]
    %v590 = vld [vmem:[%s3 + $0x9c] sm:$0xf]
    %v591 = vld [vmem:[%s3 + $0xa0] sm:$0xf]
    %v592 = vld [vmem:[%s3 + $0xa4] sm:$0xf]
    %v593 = vld [vmem:[%s3 + $0xa8] sm:$0xf]
    %v594 = vld [vmem:[%s3 + $0xac] sm:$0xf]
    %v595 = vld [vmem:[%s3 + $0xb0] sm:$0xf]
    %v596 = vld [vmem:[%s3 + $0xb4] sm:$0xf]
    %v597 = vld [vmem:[%s3 + $0xb8] sm:$0xf]
    %v598 = vld [vmem:[%s3 + $0xbc] sm:$0xf]
    %v599 = vld [vmem:[%s3 + $0xc0] sm:$0xf]
    %v600 = vld [vmem:[%s3 + $0xc4] sm:$0xf]
    %v601 = vld [vmem:[%s3 + $0xc8] sm:$0xf]
    %v602 = vld [vmem:[%s3 + $0xcc] sm:$0xf]
    %v603 = vld [vmem:[%s3 + $0xd0] sm:$0xf]
    %v604 = vld [vmem:[%s3 + $0xd4] sm:$0xf]
    %v605 = vld [vmem:[%s3 + $0xd8] sm:$0xf]
    %v606 = vld [vmem:[%s3 + $0xdc] sm:$0xf]
    %v607 = vld [vmem:[%s3 + $0xe0] sm:$0xf]
    %v608 = vld [vmem:[%s3 + $0xe4] sm:$0xf]
    %v609 = vld [vmem:[%s3 + $0xe8] sm:$0xf]
    %v610 = vld [vmem:[%s3 + $0xec] sm:$0xf]
    %v611 = vld [vmem:[%s3 + $0xf0] sm:$0xf]
    %v612 = vld [vmem:[%s3 + $0xf4] sm:$0xf]
    %v613 = vld [vmem:[%s3 + $0xf8] sm:$0xf]
    %v614 = vld [vmem:[%s3 + $0xfc] sm:$0xf]
    %v615 = vld [vmem:[%s4] sm:$0x1]
    %v617 = vperm.slane %v615, 0
    %v683 = vunpack.c.l.b16 %v551
    %v684 = vunpack.c.l.b16 %v552
    %v685 = vunpack.c.l.b16 %v553
    %v686 = vunpack.c.l.b16 %v554
    %v687 = vunpack.c.l.b16 %v555
    %v688 = vunpack.c.l.b16 %v556
    %v689 = vunpack.c.l.b16 %v557
    %v690 = vunpack.c.l.b16 %v558
    %v691 = vunpack.c.l.b16 %v559
    %v692 = vunpack.c.l.b16 %v560
    %v693 = vunpack.c.l.b16 %v561
    %v694 = vunpack.c.l.b16 %v562
    %v695 = vunpack.c.l.b16 %v563
    %v696 = vunpack.c.l.b16 %v564
    %v697 = vunpack.c.l.b16 %v565
    %v698 = vunpack.c.l.b16 %v566
    %v699 = vunpack.c.l.b16 %v567
    %v700 = vunpack.c.l.b16 %v568
    %v701 = vunpack.c.l.b16 %v569
    %v702 = vunpack.c.l.b16 %v570
    %v703 = vunpack.c.l.b16 %v571
    %v704 = vunpack.c.l.b16 %v572
    %v705 = vunpack.c.l.b16 %v573
    %v706 = vunpack.c.l.b16 %v574
    %v707 = vunpack.c.l.b16 %v575
    %v708 = vunpack.c.l.b16 %v576
    %v709 = vunpack.c.l.b16 %v577
    %v710 = vunpack.c.l.b16 %v578
    %v711 = vunpack.c.l.b16 %v579
    %v712 = vunpack.c.l.b16 %v580
    %v713 = vunpack.c.l.b16 %v581
    %v714 = vunpack.c.l.b16 %v582
    %v715 = vunpack.c.l.b16 %v583
    %v716 = vunpack.c.l.b16 %v584
    %v717 = vunpack.c.l.b16 %v585
    %v718 = vunpack.c.l.b16 %v586
    %v719 = vunpack.c.l.b16 %v587
    %v720 = vunpack.c.l.b16 %v588
    %v721 = vunpack.c.l.b16 %v589
    %v722 = vunpack.c.l.b16 %v590
    %v723 = vunpack.c.l.b16 %v591
    %v724 = vunpack.c.l.b16 %v592
    %v725 = vunpack.c.l.b16 %v593
    %v726 = vunpack.c.l.b16 %v594
    %v727 = vunpack.c.l.b16 %v595
    %v728 = vunpack.c.l.b16 %v596
    %v729 = vunpack.c.l.b16 %v597
    %v730 = vunpack.c.l.b16 %v598
    %v731 = vunpack.c.l.b16 %v599
    %v732 = vunpack.c.l.b16 %v600
    %v733 = vunpack.c.l.b16 %v601
    %v734 = vunpack.c.l.b16 %v602
    %v735 = vunpack.c.l.b16 %v603
    %v736 = vunpack.c.l.b16 %v604
    %v737 = vunpack.c.l.b16 %v605
    %v738 = vunpack.c.l.b16 %v606
    %v739 = vunpack.c.l.b16 %v607
    %v740 = vunpack.c.l.b16 %v608
    %v741 = vunpack.c.l.b16 %v609
    %v742 = vunpack.c.l.b16 %v610
    %v743 = vunpack.c.l.b16 %v611
    %v744 = vunpack.c.l.b16 %v612
    %v745 = vunpack.c.l.b16 %v613
    %v746 = vunpack.c.l.b16 %v614
    %v747 = vpack.c.b16 %v684, %v683
    %v748 = vpack.c.b16 %v686, %v685
    %v749 = vpack.c.b16 %v688, %v687
    %v750 = vpack.c.b16 %v690, %v689
    %v751 = vpack.c.b16 %v692, %v691
    %v752 = vpack.c.b16 %v694, %v693
    %v753 = vpack.c.b16 %v696, %v695
    %v754 = vpack.c.b16 %v698, %v697
    %v755 = vpack.c.b16 %v700, %v699
    %v756 = vpack.c.b16 %v702, %v701
    %v757 = vpack.c.b16 %v704, %v703
    %v758 = vpack.c.b16 %v706, %v705
    %v759 = vpack.c.b16 %v708, %v707
    %v760 = vpack.c.b16 %v710, %v709
    %v761 = vpack.c.b16 %v712, %v711
    %v762 = vpack.c.b16 %v714, %v713
    %v763 = vpack.c.b16 %v716, %v715
    %v764 = vpack.c.b16 %v718, %v717
    %v765 = vpack.c.b16 %v720, %v719
    %v766 = vpack.c.b16 %v722, %v721
    %v767 = vpack.c.b16 %v724, %v723
    %v768 = vpack.c.b16 %v726, %v725
    %v769 = vpack.c.b16 %v728, %v727
    %v770 = vpack.c.b16 %v730, %v729
    %v771 = vpack.c.b16 %v732, %v731
    %v772 = vpack.c.b16 %v734, %v733
    %v773 = vpack.c.b16 %v736, %v735
    %v774 = vpack.c.b16 %v738, %v737
    %v775 = vpack.c.b16 %v740, %v739
    %v776 = vpack.c.b16 %v742, %v741
    %v777 = vpack.c.b16 %v744, %v743
    %v778 = vpack.c.b16 %v746, %v745
    %811 = vmatpush.bf16.msra.mxu0 %v754
    %812 = vmatpush.bf16.msra.mxu0 %v753
    %813 = vmatpush.bf16.msra.mxu0 %v752
    %814 = vmatpush.bf16.msra.mxu0 %v751
    %815 = vmatpush.bf16.msra.mxu0 %v750
    %816 = vmatpush.bf16.msra.mxu0 %v749
    %817 = vmatpush.bf16.msra.mxu0 %v748
    %818 = vmatpush.bf16.msra.mxu0 %v747
    %819 = vmatmul.bf16.gmra.mxu0 %v547
    %v820 = vpop.f32.mrf.mxu0
    %v821 = vadd.f32 %v617, %v820
    %v822 = vpop.f32.mrf.mxu0
    %823 = vdwg.mxu0
    %824 = vmatpush.bf16.msra.mxu0 %v762
    %825 = vmatpush.bf16.msra.mxu0 %v761
    %826 = vmatpush.bf16.msra.mxu0 %v760
    %827 = vmatpush.bf16.msra.mxu0 %v759
    %828 = vmatpush.bf16.msra.mxu0 %v758
    %829 = vmatpush.bf16.msra.mxu0 %v757
    %830 = vmatpush.bf16.msra.mxu0 %v756
    %831 = vmatpush.bf16.msra.mxu0 %v755
    %832 = vmatmul.bf16.gmra.mxu0 %v548
    %v833 = vpop.f32.mrf.mxu0
    %v834 = vadd.f32 %v821, %v833
    %v835 = vpop.f32.mrf.mxu0
    %836 = vdwg.mxu0
    %837 = vmatpush.bf16.msra.mxu0 %v770
    %838 = vmatpush.bf16.msra.mxu0 %v769
    %839 = vmatpush.bf16.msra.mxu0 %v768
    %840 = vmatpush.bf16.msra.mxu0 %v767
    %841 = vmatpush.bf16.msra.mxu0 %v766
    %842 = vmatpush.bf16.msra.mxu0 %v765
    %843 = vmatpush.bf16.msra.mxu0 %v764
    %844 = vmatpush.bf16.msra.mxu0 %v763
    %845 = vmatmul.bf16.gmra.mxu0 %v549
    %v846 = vpop.f32.mrf.mxu0
    %v847 = vadd.f32 %v834, %v846
    %v848 = vpop.f32.mrf.mxu0
    %849 = vdwg.mxu0
    %850 = vmatpush.bf16.msra.mxu0 %v778
    %851 = vmatpush.bf16.msra.mxu0 %v777
    %852 = vmatpush.bf16.msra.mxu0 %v776
    %853 = vmatpush.bf16.msra.mxu0 %v775
    %854 = vmatpush.bf16.msra.mxu0 %v774
    %855 = vmatpush.bf16.msra.mxu0 %v773
    %856 = vmatpush.bf16.msra.mxu0 %v772
    %857 = vmatpush.bf16.msra.mxu0 %v771
    %858 = vmatmul.bf16.gmra.mxu0 %v550
    %v859 = vpop.f32.mrf.mxu0
    %v860 = vadd.f32 %v847, %v859
    %v861 = vpop.f32.mrf.mxu0
    %862 = vdwg.mxu0
    %vm863 = vcmask 523264
    %864 = vst.msk [vmem:[#allocation5] sm:$0xff] %vm863, %v860
    // Predicated region
    $region26: #{tpu_custom_call.1} parent=1 // pred_check
      _
    $region27: #{tpu_custom_call.1} parent=1 // pred_check_branch
      %866 = sbr.rel (0) target = $region29
    $region28: #{tpu_custom_call.1} parent=1 // pred_region
      %868 = vsyncadd [#allocation4], 0
      %s870 = sshll.u32 [#allocation5], 4
      %s871 = int_to_ptr.vmem [resolvable:$true] %s870
      %s872 = sshll.u32 %s5, 4
      %s873 = int_to_ptr.hbm [resolvable:$true] %s872
      %875 = dma.vmem_to_hbm [thread:$0]  %s871, 128, %s873, [#allocation4]
    $region29: #{tpu_custom_call.1} parent=1 // pred_fallthru
      _
    // Predicated region
    $region30: #{tpu_custom_call.1} parent=1 // pred_check
      _
    $region31: #{tpu_custom_call.1} parent=1 // pred_check_branch
      %877 = sbr.rel (0) target = $region33
    $region32: #{tpu_custom_call.1} parent=1 // pred_region
      %879 = dma.done [#allocation4], 128
    $region33: #{tpu_custom_call.1} parent=1 // pred_fallthru
      _
    %880 = vsyncpa [#allocation3], 1
    %881 = vsyncpa [#allocation4], 1

</llo_original>
